<compile_context>
chip_gen: v6e
topology: v6e:2x2x1
jax: 0.10.0
libtpu: 0.0.40
codegen_flags: <defaults>
</compile_context>

<pallas_src>
import functools

import jax
import jax.numpy as jnp
from jax.experimental import pallas as pl
from jax.experimental.pallas import tpu as pltpu


def _hybrid_ode_kernel(s_ref, adj_ref, dinv_ref, nscale_ref, xs_ref, xnbt_ref,
                       xaug_ref, out_ref, *, bounded_logits, approx_recip):
    f32 = jnp.float32
    tm = out_ref.shape[0]
    d = out_ref.shape[1]

    adj_t = adj_ref[...]                          # (TM, Np)  mxu dtype (bf16/f32)
    dinv_r = dinv_ref[...]                        # (TM, 1)   deg^{-1/2}, f32
    nsc_r = nscale_ref[...]                       # (TM, 1)   sqrt(beta)/||x||, f32

    # Row block of x, sliced from the resident [x | valid] operand (no extra DMA).
    row0 = pl.program_id(0) * tm
    if tm % 8 == 0:
        row0 = pl.multiple_of(row0, 8)
    xrow = xaug_ref[pl.ds(row0, tm), :]           # (TM, D+1)
    x_t = xrow[:, 0:d].astype(f32)                # (TM, D)
    xnb_row = (x_t * nsc_r).astype(xnbt_ref.dtype)

    # --- graph diffusion: D^{-1/2} A D^{-1/2} x (row scaling applied post-matmul)
    ax = jnp.dot(adj_t, xs_ref[...], preferred_element_type=f32)          # (TM, D)

    # --- cosine-similarity attention (sqrt(beta) folded into xnb) ------------
    sim_b = jnp.dot(xnb_row, xnbt_ref[...], preferred_element_type=f32)   # (TM, Np)
    logits = sim_b * adj_t                         # lazy bf16->f32 promote (mask);
                                                   # zeros where adj==0, as in torch
    if bounded_logits:
        e = jnp.exp(logits)                        # |logits| <= beta <= 10: safe in f32
    else:
        m = jnp.max(logits, axis=1, keepdims=True)
        e = jnp.exp(logits - m)
    e_m = e.astype(xaug_ref.dtype)                 # bf16 for the MXU (no-op in f32 mode)

    # e @ [x | valid] gives the unnormalized aggregation AND the softmax
    # denominator in one MXU pass; normalize afterwards with an EUP reciprocal.
    agg_aug = jnp.dot(e_m, xaug_ref[...], preferred_element_type=f32)     # (TM, D+1)
    agg = agg_aug[:, 0:d]
    rowsum = agg_aug[:, d:d + 1]
    scale = s_ref[0] * pl.reciprocal(rowsum, approx=approx_recip)         # (TM, 1)

    # out = dinv*Ax + sigmoid(a)*attn@x - (1+sigmoid(a))*x   (both "-x" fused)
    out_ref[...] = (dinv_r * ax + scale * agg - s_ref[1] * x_t).astype(out_ref.dtype)


def _vmem_estimate(n_tot, d, tm, mxu_bytes):
    resident = 2 * (2 * n_tot * d + n_tot * (d + 1)) * mxu_bytes   # xs, xnb^T, [x|1] (x2 buffers)
    adj_stream = 2 * tm * n_tot * mxu_bytes                        # adj double-buffer
    temps = 3 * tm * n_tot * 4 + tm * n_tot * mxu_bytes            # sim_b, logits, e (f32) + e cast
    small = 8 * tm * (d + 1) * 4                                   # row tiles + out buffers
    return resident + adj_stream + temps + small


def hybrid_ode_forward(t, x, adj, alpha, beta, *,
                       mxu_dtype=jnp.bfloat16, approx_recip=True,
                       bounded_logits=True, tm=256):
    """Pallas forward of HybridODE.  `t` is unused (matches the torch module)."""
    del t
    n, d = x.shape
    f32 = jnp.float32
    mxu_bytes = jnp.dtype(mxu_dtype).itemsize

    # Generation-aware VMEM budget (v5e/v6e: 128 MiB, v7x: 64 MiB per core).
    try:
        vmem_cap = int(pltpu.get_tpu_info().vmem_capacity_bytes)
    except Exception:
        vmem_cap = 64 * 1024 * 1024

    # Row-block size: full block for small N; otherwise 256, shrinking to 128
    # when the (TM, N) working set would crowd VMEM (matters on v7x).
    if n <= tm:
        tm = n
    else:
        while tm > 128 and _vmem_estimate(n, d, tm, mxu_bytes) > 0.4 * vmem_cap:
            tm //= 2
    n_pad = tm * pl.cdiv(n, tm)

    x32 = x.astype(f32)
    adj32 = adj.astype(f32)
    if n_pad != n:
        # Zero pad rows/cols: zero degree (clamped to 1), zero norm (clamped to
        # eps), adj==0, valid==0 -> pads never reach rowsum or the aggregation.
        x32 = jnp.pad(x32, ((0, n_pad - n), (0, 0)))
        adj32 = jnp.pad(adj32, ((0, n_pad - n), (0, n_pad - n)))

    # Degree needs a global reduction over adj -> do it once in XLA; each row
    # tile is then independent.
    deg = jnp.maximum(jnp.sum(adj32, axis=1, keepdims=True), 1.0)       # (Np, 1)
    dinv = jax.lax.rsqrt(deg)                                           # (Np, 1)
    xs = (dinv * x32).astype(mxu_dtype)                                 # (Np, D)

    # Cosine-similarity operands; eps matches torch.cosine_similarity. sqrt(beta)
    # is folded in (beta > 0 after the module's clamp), so
    # xnb_row @ xnb^T == beta * cosine_sim with no O(N^2) beta multiply.
    norm = jnp.maximum(jnp.sqrt(jnp.sum(x32 * x32, axis=1, keepdims=True)), 1e-8)
    nscale = jnp.sqrt(jnp.asarray(beta, f32)) / norm                    # (Np, 1)
    xnbt = (x32 * nscale).T.astype(mxu_dtype)                           # (D, Np) pre-transposed

    # [x | valid]: the extra column turns e @ xaug into (agg, rowsum) on the MXU.
    valid = (jnp.arange(n_pad) < n).astype(f32)[:, None]
    xaug = jnp.concatenate([x32, valid], axis=1).astype(mxu_dtype)      # (Np, D+1)

    adj_m = adj32.astype(mxu_dtype)   # 0/1 adjacency is exact in bf16; halves the DMA
    s_alpha = jax.nn.sigmoid(jnp.asarray(alpha, f32))
    scal = jnp.stack([s_alpha, 1.0 + s_alpha]).astype(f32)              # SMEM scalars

    vmem_est = _vmem_estimate(n_pad, d, tm, mxu_bytes)
    cp_kwargs = dict(dimension_semantics=("parallel",))
    if vmem_est > 12 * 1024 * 1024:   # v5e's default scoped limit is only 16 MiB
        cp_kwargs["vmem_limit_bytes"] = int(min(1.5 * vmem_est, 0.75 * vmem_cap))

    kernel = functools.partial(_hybrid_ode_kernel,
                               bounded_logits=bounded_logits,
                               approx_recip=approx_recip)
    grid_spec = pltpu.PrefetchScalarGridSpec(
        num_scalar_prefetch=0,
        grid=(n_pad // tm,),
        in_specs=[
            pl.BlockSpec(memory_space=pltpu.MemorySpace.SMEM),   # [sig(a), 1+sig(a)]
            pl.BlockSpec((tm, n_pad), lambda i: (i, 0)),         # adj row block (mxu dtype)
            pl.BlockSpec((tm, 1), lambda i: (i, 0)),             # deg^{-1/2} rows
            pl.BlockSpec((tm, 1), lambda i: (i, 0)),             # sqrt(beta)/||x|| rows
            pl.BlockSpec((n_pad, d), lambda i: (0, 0)),          # xs     (resident)
            pl.BlockSpec((d, n_pad), lambda i: (0, 0)),          # xnb^T  (resident)
            pl.BlockSpec((n_pad, d + 1), lambda i: (0, 0)),      # [x|1]  (resident)
        ],
        out_specs=pl.BlockSpec((tm, d), lambda i: (i, 0)),
    )
    out = pl.pallas_call(
        kernel,
        out_shape=jax.ShapeDtypeStruct((n_pad, d), x.dtype),
        grid_spec=grid_spec,
        compiler_params=pltpu.CompilerParams(**cp_kwargs),
    )(scal, adj_m, dinv, nscale, xs, xnbt, xaug)
    return out[:n] if n_pad != n else out


def hybrid_ode_ref(t, x, adj, alpha, beta):
    """Pure-JAX reference mirroring the PyTorch forward."""
    del t
    adj = adj.astype(x.dtype)
    deg = jnp.maximum(adj.sum(1), 1.0)
    dinv = deg ** -0.5
    adj_norm = dinv[:, None] * adj * dinv[None, :]
    diffusion = adj_norm @ x - x
    norm = jnp.maximum(jnp.sqrt(jnp.sum(x * x, axis=1)), 1e-8)
    sim = (x @ x.T) / (norm[:, None] * norm[None, :])
    attn = jax.nn.softmax(beta * sim * adj, axis=1)
    return diffusion + jax.nn.sigmoid(alpha) * (attn @ x - x)


if __name__ == "__main__":
    # Deterministic parameters (nn.Parameter(0.5) / nn.Parameter(1.0) after the
    # module's clamp to [0.01, 0.99] and [0.1, 10.0]).
    alpha = jnp.float32(min(max(0.5, 0.01), 0.99))   # 0.5
    beta = jnp.float32(min(max(1.0, 0.1), 10.0))     # 1.0

    # Small shapes: N=8 nodes, D=32 hidden features.
    key = jax.random.PRNGKey(0)
    kx, ka = jax.random.split(key)
    N, D = 8, 32
    x = jax.random.normal(kx, (N, D), dtype=jnp.float32)
    adj = (jax.random.uniform(ka, (N, N)) > 0.5).astype(jnp.float32)
    t = jnp.float32(0.0)

    ref = hybrid_ode_ref(t, x, adj, alpha, beta)

    # Strict mode: f32 MXU operands, exact reciprocal, max-shifted softmax --
    # validates the algorithm against the pure-JAX reference at tight tolerance.
    out_f32 = jax.block_until_ready(
        hybrid_ode_forward(t, x, adj, alpha, beta, mxu_dtype=jnp.float32,
                           approx_recip=False, bounded_logits=False))
    assert out_f32.shape == (N, D) and out_f32.dtype == x.dtype
    assert jnp.allclose(out_f32, ref, rtol=1e-3, atol=1e-4), "f32 mode mismatch"

    # Default fast mode: bf16 MXU operands + bf16 adj stream, f32 accumulation,
    # skip-max softmax (binary adjacency), approx reciprocal.
    out_fast = jax.block_until_ready(hybrid_ode_forward(t, x, adj, alpha, beta))
    assert out_fast.shape == (N, D) and out_fast.dtype == x.dtype
    assert bool(jnp.all(jnp.isfinite(out_fast)))
    assert jnp.allclose(out_fast, ref, rtol=5e-2, atol=5e-2), "bf16 mode mismatch"

    print("KERNEL_OK")
</pallas_src>

<mosaic_0001>
module attributes {stable_mosaic.version = 11 : i64} {
  func.func @_hybrid_ode_kernel(%arg0: i32, %arg1: memref<2xf32, #tpu.memory_space<smem>>, %arg2: memref<8x8xf32, #tpu.memory_space<vmem>>, %arg3: memref<8x1xf32, #tpu.memory_space<vmem>>, %arg4: memref<8x1xf32, #tpu.memory_space<vmem>>, %arg5: memref<8x32xf32, #tpu.memory_space<vmem>>, %arg6: memref<32x8xf32, #tpu.memory_space<vmem>>, %arg7: memref<8x33xf32, #tpu.memory_space<vmem>>, %arg8: memref<8x32xf32, #tpu.memory_space<vmem>>) attributes {dimension_semantics = [#tpu.dimension_semantics<parallel>], iteration_bounds = array<i64: 1>, scalar_prefetch = 0 : i64, scratch_operands = 0 : i64, tpu.core_type = #tpu.core_type<tc>, window_params = [{transform_indices = @transform_0, window_bounds = array<i64: 2>}, {transform_indices = @transform_1, window_bounds = array<i64: 8, 8>}, {transform_indices = @transform_2, window_bounds = array<i64: 8, 1>}, {transform_indices = @transform_3, window_bounds = array<i64: 8, 1>}, {pipeline_mode = #tpu.pipeline_mode<synchronous>, transform_indices = @transform_4, window_bounds = array<i64: 8, 32>}, {pipeline_mode = #tpu.pipeline_mode<synchronous>, transform_indices = @transform_5, window_bounds = array<i64: 32, 8>}, {pipeline_mode = #tpu.pipeline_mode<synchronous>, transform_indices = @transform_6, window_bounds = array<i64: 8, 33>}, {transform_indices = @transform_7, window_bounds = array<i64: 8, 32>}]} {
    %c0 = arith.constant 0 : index
    %c0_0 = arith.constant 0 : index
    %0 = vector.load %arg2[%c0, %c0_0] : memref<8x8xf32, #tpu.memory_space<vmem>>, vector<8x8xf32>
    %c0_1 = arith.constant 0 : index
    %c0_2 = arith.constant 0 : index
    %1 = vector.load %arg3[%c0_1, %c0_2] : memref<8x1xf32, #tpu.memory_space<vmem>>, vector<8x1xf32>
    %c0_3 = arith.constant 0 : index
    %c0_4 = arith.constant 0 : index
    %2 = vector.load %arg4[%c0_3, %c0_4] : memref<8x1xf32, #tpu.memory_space<vmem>>, vector<8x1xf32>
    %c8_i32 = arith.constant 8 : i32
    %3 = arith.muli %arg0, %c8_i32 : i32
    %4 = tpu.assume_multiple %3, 8 : i32
    %5 = arith.index_cast %4 : i32 to index
    %c0_5 = arith.constant 0 : index
    %6 = vector.load %arg7[%5, %c0_5] : memref<8x33xf32, #tpu.memory_space<vmem>>, vector<8x33xf32>
    %7 = vector.extract_strided_slice %6 {offsets = [0, 0], sizes = [8, 32], strides = [1, 1]} : vector<8x33xf32> to vector<8x32xf32>
    %8 = vector.broadcast %2 : vector<8x1xf32> to vector<8x32xf32>
    %9 = arith.mulf %7, %8 : vector<8x32xf32>
    %c0_6 = arith.constant 0 : index
    %c0_7 = arith.constant 0 : index
    %10 = vector.load %arg5[%c0_6, %c0_7] : memref<8x32xf32, #tpu.memory_space<vmem>>, vector<8x32xf32>
    %cst = arith.constant dense<0.000000e+00> : vector<8x32xf32>
    %11 = tpu.matmul %0, %10, %cst {dimension_numbers = #tpu.dot_dimension_numbers<[1], [0], [0], [1], [0, 0, 1, 1], [], []>} : vector<8x8xf32>, vector<8x32xf32>, vector<8x32xf32> -> vector<8x32xf32>
    %c0_8 = arith.constant 0 : index
    %c0_9 = arith.constant 0 : index
    %12 = vector.load %arg6[%c0_8, %c0_9] : memref<32x8xf32, #tpu.memory_space<vmem>>, vector<32x8xf32>
    %cst_10 = arith.constant dense<0.000000e+00> : vector<8x8xf32>
    %13 = tpu.matmul %9, %12, %cst_10 {dimension_numbers = #tpu.dot_dimension_numbers<[1], [0], [0], [1], [0, 0, 1, 1], [], []>} : vector<8x32xf32>, vector<32x8xf32>, vector<8x8xf32> -> vector<8x8xf32>
    %14 = arith.mulf %13, %0 : vector<8x8xf32>
    %cst_11 = arith.constant dense<0xFF800000> : vector<8xf32>
    %15 = vector.multi_reduction <maximumf>, %14, %cst_11 [1] : vector<8x8xf32> to vector<8xf32>
    %16 = vector.shape_cast %15 : vector<8xf32> to vector<8x1xf32>
    %17 = vector.broadcast %16 : vector<8x1xf32> to vector<8x8xf32>
    %18 = arith.subf %14, %17 : vector<8x8xf32>
    %19 = math.exp %18 : vector<8x8xf32>
    %c0_12 = arith.constant 0 : index
    %c0_13 = arith.constant 0 : index
    %20 = vector.load %arg7[%c0_12, %c0_13] : memref<8x33xf32, #tpu.memory_space<vmem>>, vector<8x33xf32>
    %cst_14 = arith.constant dense<0.000000e+00> : vector<8x33xf32>
    %21 = tpu.matmul %19, %20, %cst_14 {dimension_numbers = #tpu.dot_dimension_numbers<[1], [0], [0], [1], [0, 0, 1, 1], [], []>} : vector<8x8xf32>, vector<8x33xf32>, vector<8x33xf32> -> vector<8x33xf32>
    %22 = vector.extract_strided_slice %21 {offsets = [0, 0], sizes = [8, 32], strides = [1, 1]} : vector<8x33xf32> to vector<8x32xf32>
    %23 = vector.extract_strided_slice %21 {offsets = [0, 32], sizes = [8, 1], strides = [1, 1]} : vector<8x33xf32> to vector<8x1xf32>
    %c0_15 = arith.constant 0 : index
    %24 = memref.load %arg1[%c0_15] : memref<2xf32, #tpu.memory_space<smem>>
    %25 = tpu.reciprocal %23 : vector<8x1xf32> -> vector<8x1xf32>
    %26 = vector.broadcast %24 : f32 to vector<8x1xf32>
    %27 = arith.mulf %26, %25 : vector<8x1xf32>
    %28 = vector.broadcast %1 : vector<8x1xf32> to vector<8x32xf32>
    %29 = arith.mulf %28, %11 : vector<8x32xf32>
    %30 = vector.broadcast %27 : vector<8x1xf32> to vector<8x32xf32>
    %31 = arith.mulf %30, %22 : vector<8x32xf32>
    %32 = arith.addf %29, %31 : vector<8x32xf32>
    %c1 = arith.constant 1 : index
    %33 = memref.load %arg1[%c1] : memref<2xf32, #tpu.memory_space<smem>>
    %34 = vector.broadcast %33 : f32 to vector<8x32xf32>
    %35 = arith.mulf %34, %7 : vector<8x32xf32>
    %36 = arith.subf %32, %35 : vector<8x32xf32>
    %c0_16 = arith.constant 0 : index
    %c0_17 = arith.constant 0 : index
    %37 = vector.load %arg8[%c0_16, %c0_17] : memref<8x32xf32, #tpu.memory_space<vmem>>, vector<8x32xf32>
    tpu.vector_store %arg8[%c0_16, %c0_17], %36 {strides = array<i32>} : memref<8x32xf32, #tpu.memory_space<vmem>>, vector<8x32xf32>,
    return
  }
  func.func @transform_0(%arg0: i32) -> i32 {
    %c0_i32 = arith.constant 0 : i32
    %c0_i32_0 = arith.constant 0 : i32
    return %c0_i32 : i32
  }
  func.func @transform_1(%arg0: i32) -> (i32, i32) {
    %c0_i32 = arith.constant 0 : i32
    %c0_i32_0 = arith.constant 0 : i32
    return %arg0, %c0_i32 : i32, i32
  }
  func.func @transform_2(%arg0: i32) -> (i32, i32) {
    %c0_i32 = arith.constant 0 : i32
    %c0_i32_0 = arith.constant 0 : i32
    return %arg0, %c0_i32 : i32, i32
  }
  func.func @transform_3(%arg0: i32) -> (i32, i32) {
    %c0_i32 = arith.constant 0 : i32
    %c0_i32_0 = arith.constant 0 : i32
    return %arg0, %c0_i32 : i32, i32
  }
  func.func @transform_4(%arg0: i32) -> (i32, i32) {
    %c0_i32 = arith.constant 0 : i32
    %c0_i32_0 = arith.constant 0 : i32
    %c0_i32_1 = arith.constant 0 : i32
    return %c0_i32, %c0_i32_0 : i32, i32
  }
  func.func @transform_5(%arg0: i32) -> (i32, i32) {
    %c0_i32 = arith.constant 0 : i32
    %c0_i32_0 = arith.constant 0 : i32
    %c0_i32_1 = arith.constant 0 : i32
    return %c0_i32, %c0_i32_0 : i32, i32
  }
  func.func @transform_6(%arg0: i32) -> (i32, i32) {
    %c0_i32 = arith.constant 0 : i32
    %c0_i32_0 = arith.constant 0 : i32
    %c0_i32_1 = arith.constant 0 : i32
    return %c0_i32, %c0_i32_0 : i32, i32
  }
  func.func @transform_7(%arg0: i32) -> (i32, i32) {
    %c0_i32 = arith.constant 0 : i32
    %c0_i32_0 = arith.constant 0 : i32
    return %arg0, %c0_i32 : i32, i32
  }
}

</mosaic_0001>

<llo_original>
// kernel: tpu_custom_call.1
$region0: #{tpu_custom_call.1}
  #allocation0 [shape = 'u32[]', space=smem, size = 0x4, offset = 0x4, fixed_abs, tag = 'smem constant byte address 0x4 - core index']
  #allocation1 [shape = 'u32[144,128]{1,0:T(1,128)}', space=vmem, size = 0x12000, scoped, tag = 'internal scratch']
  %s0 = inlined_call_operand.vmem [shape: f32[2], index: 0, kind: input, shape index: {}]
  %s1 = inlined_call_operand.vmem [shape: f32[8,8], index: 1, kind: input, shape index: {}]
  %s2 = inlined_call_operand.vmem [shape: f32[8,1], index: 2, kind: input, shape index: {}]
  %s3 = inlined_call_operand.vmem [shape: f32[8,1], index: 3, kind: input, shape index: {}]
  %s4 = inlined_call_operand.vmem [shape: f32[8,32], index: 4, kind: input, shape index: {}]
  %s5 = inlined_call_operand.vmem [shape: f32[32,8], index: 5, kind: input, shape index: {}]
  %s6 = inlined_call_operand.vmem [shape: f32[8,33], index: 6, kind: input, shape index: {}]
  %s7 = inlined_call_operand.hbm [shape: f32[8,32], index: 7, kind: output, shape index: {}]
  %s8 = sld [smem:[#allocation0]]
  $region42: #{tpu_custom_call.1} parent=0
    _
  %s10 = ssub.s32 1, %s8
  %s11 = scalar_select 0, %s10, %s8
  $region1: #{tpu_custom_call.1} parent=0
    #allocation2 [shape = 'u8[512]{0}', space=smem, size = 0x200, scoped, tag = 'input window, operand 0, single buffered']
    #allocation3 [shape = 's32[1]{0}', space=sflag, size = 0x4, scoped, tag = 'scoped memory for tpu_custom_call.1']
    #allocation4 [shape = 's32[1]{0}', space=sflag, size = 0x4, scoped, tag = 'scoped memory for tpu_custom_call.1']
    #allocation5 [shape = 'u8[4096]{0}', space=vmem, size = 0x1000, scoped, tag = 'output window, operand 0, single buffered']
    %12 = vsyncpa [#allocation4], 0
    %13 = vsyncpa [#allocation3], 0
    // Predicated region
    $region2: #{tpu_custom_call.1} parent=1 // pred_check
      _
    $region3: #{tpu_custom_call.1} parent=1 // pred_check_branch
      %15 = sbr.rel (0) target = $region5
    $region4: #{tpu_custom_call.1} parent=1 // pred_region
      %s17 = ssub.s32 16, 16
      %18 = vsyncadd [#allocation4], %s17
      %s20 = sshll.u32 %s0, 4
      %s21 = int_to_ptr.vmem [resolvable:$true] %s20
      %23 = dma.vmem_to_smem %s21, 16, [#allocation2], [#allocation4]
    $region5: #{tpu_custom_call.1} parent=1 // pred_fallthru
      _
    // Predicated region
    $region6: #{tpu_custom_call.1} parent=1 // pred_check
      _
    $region7: #{tpu_custom_call.1} parent=1 // pred_check_branch
      %25 = sbr.rel (0) target = $region9
    $region8: #{tpu_custom_call.1} parent=1 // pred_region
      _
    $region9: #{tpu_custom_call.1} parent=1 // pred_fallthru
      _
    // Predicated region
    $region10: #{tpu_custom_call.1} parent=1 // pred_check
      _
    $region11: #{tpu_custom_call.1} parent=1 // pred_check_branch
      %27 = sbr.rel (0) target = $region13
    $region12: #{tpu_custom_call.1} parent=1 // pred_region
      _
    $region13: #{tpu_custom_call.1} parent=1 // pred_fallthru
      _
    // Predicated region
    $region14: #{tpu_custom_call.1} parent=1 // pred_check
      _
    $region15: #{tpu_custom_call.1} parent=1 // pred_check_branch
      %29 = sbr.rel (0) target = $region17
    $region16: #{tpu_custom_call.1} parent=1 // pred_region
      _
    $region17: #{tpu_custom_call.1} parent=1 // pred_fallthru
      _
    // Predicated region
    $region18: #{tpu_custom_call.1} parent=1 // pred_check
      _
    $region19: #{tpu_custom_call.1} parent=1 // pred_check_branch
      %31 = sbr.rel (0) target = $region21
    $region20: #{tpu_custom_call.1} parent=1 // pred_region
      _
    $region21: #{tpu_custom_call.1} parent=1 // pred_fallthru
      _
    // Predicated region
    $region22: #{tpu_custom_call.1} parent=1 // pred_check
      _
    $region23: #{tpu_custom_call.1} parent=1 // pred_check_branch
      %33 = sbr.rel (0) target = $region25
    $region24: #{tpu_custom_call.1} parent=1 // pred_region
      _
    $region25: #{tpu_custom_call.1} parent=1 // pred_fallthru
      _
    // Predicated region
    $region26: #{tpu_custom_call.1} parent=1 // pred_check
      _
    $region27: #{tpu_custom_call.1} parent=1 // pred_check_branch
      %35 = sbr.rel (0) target = $region29
    $region28: #{tpu_custom_call.1} parent=1 // pred_region
      _
    $region29: #{tpu_custom_call.1} parent=1 // pred_fallthru
      _
    // Predicated region
    $region30: #{tpu_custom_call.1} parent=1 // pred_check
      _
    $region31: #{tpu_custom_call.1} parent=1 // pred_check_branch
      %37 = sbr.rel (0) target = $region33
    $region32: #{tpu_custom_call.1} parent=1 // pred_region
      %38 = dma.done [#allocation4], 16
    $region33: #{tpu_custom_call.1} parent=1 // pred_fallthru
      _
    %39 = sfence
    %v40 = vld [vmem:[%s1] sm:$0xff]
    %v41 = vld [vmem:[%s2] sm:$0xff]
    %v42 = vld [vmem:[%s3] sm:$0xff]
    %s43 = smul.u32 0, 8
    %s44 = scalar_lea.vmem %s6, %s43
    %v45 = vld [vmem:[%s44] sm:$0xff]
    %47 = vset.pattern.permute.xlu0 0
    %48 = vperm.xlu0 %47, %v42
    %v49 = vpop.permute.xlu0 %48
    %v51 = vmul.f32 %v45, %v49
    %v52 = vld [vmem:[%s4] sm:$0xff]
    %vm53 = vcmask 64512
    %v55 = vsel %vm53, %v40, 0
    %57 = vmatprep.subr.mxu0 0.0
    %58 = vmatpush1.msra.mxu0 0.0
    %59 = vmatprep.subr.mxu0 0.0
    %60 = vmatpush1.msra.mxu0 0.0
    %61 = vmatprep.subr.mxu0 0.0
    %62 = vmatpush1.msra.mxu0 0.0
    %63 = vmatprep.subr.mxu0 0.0
    %64 = vmatpush1.msra.mxu0 0.0
    %65 = vmatprep.subr.mxu0 0.0
    %66 = vmatpush1.msra.mxu0 0.0
    %67 = vmatprep.subr.mxu0 0.0
    %68 = vmatpush1.msra.mxu0 0.0
    %69 = vmatprep.subr.mxu0 0.0
    %70 = vmatpush1.msra.mxu0 0.0
    %71 = vmatprep.subr.mxu0 0.0
    %72 = vmatpush1.msra.mxu0 0.0
    %73 = vmatprep.subr.mxu0 0.0
    %74 = vmatpush1.msra.mxu0 0.0
    %75 = vmatprep.subr.mxu0 0.0
    %76 = vmatpush1.msra.mxu0 0.0
    %77 = vmatprep.subr.mxu0 0.0
    %78 = vmatpush1.msra.mxu0 0.0
    %79 = vmatprep.subr.mxu0 0.0
    %80 = vmatpush1.msra.mxu0 0.0
    %81 = vmatprep.subr.mxu0 0.0
    %82 = vmatpush1.msra.mxu0 0.0
    %83 = vmatprep.subr.mxu0 0.0
    %84 = vmatpush1.msra.mxu0 0.0
    %85 = vmatprep.subr.mxu0 0.0
    %86 = vmatpush1.msra.mxu0 0.0
    %87 = vmatprep.subr.mxu0 0.0
    %88 = vmatpush1.msra.mxu0 %v52
    %89 = vmatprep.subr.mxu0 0.0
    %90 = vmatpush2.msra.mxu0 0.0
    %91 = vmatprep.subr.mxu0 0.0
    %92 = vmatpush2.msra.mxu0 0.0
    %93 = vmatprep.subr.mxu0 0.0
    %94 = vmatpush2.msra.mxu0 0.0
    %95 = vmatprep.subr.mxu0 0.0
    %96 = vmatpush2.msra.mxu0 0.0
    %97 = vmatprep.subr.mxu0 0.0
    %98 = vmatpush2.msra.mxu0 0.0
    %99 = vmatprep.subr.mxu0 0.0
    %100 = vmatpush2.msra.mxu0 0.0
    %101 = vmatprep.subr.mxu0 0.0
    %102 = vmatpush2.msra.mxu0 0.0
    %103 = vmatprep.subr.mxu0 0.0
    %104 = vmatpush2.msra.mxu0 0.0
    %105 = vmatprep.subr.mxu0 0.0
    %106 = vmatpush2.msra.mxu0 0.0
    %107 = vmatprep.subr.mxu0 0.0
    %108 = vmatpush2.msra.mxu0 0.0
    %109 = vmatprep.subr.mxu0 0.0
    %110 = vmatpush2.msra.mxu0 0.0
    %111 = vmatprep.subr.mxu0 0.0
    %112 = vmatpush2.msra.mxu0 0.0
    %113 = vmatprep.subr.mxu0 0.0
    %114 = vmatpush2.msra.mxu0 0.0
    %115 = vmatprep.subr.mxu0 0.0
    %116 = vmatpush2.msra.mxu0 0.0
    %117 = vmatprep.subr.mxu0 0.0
    %118 = vmatpush2.msra.mxu0 0.0
    %119 = vmatprep.subr.mxu0 0.0
    %120 = vmatpush2.msra.mxu0 0.0
    %121 = vmatprep.mubr.f32.mxu0 0.0
    %122 = vmatmul.mubr.f32.gmra.mxu0 %v55
    %v123 = vpop.f32.mrf.mxu0
    %v124 = vadd.f32 0.0, %v123
    %v125 = vpop.f32.mrf.mxu0
    %126 = vdwg.mxu0
    %v127 = vld [vmem:[%s5] sm:$0xff]
    %v128 = vld [vmem:[%s5 + $0x8] sm:$0xff]
    %v129 = vld [vmem:[%s5 + $0x10] sm:$0xff]
    %v130 = vld [vmem:[%s5 + $0x18] sm:$0xff]
    %vm131 = vcmask 261120
    %v133 = vsel %vm131, %v51, 0
    %135 = vmatprep.subr.mxu0 0.0
    %136 = vmatpush1.msra.mxu0 0.0
    %137 = vmatprep.subr.mxu0 0.0
    %138 = vmatpush1.msra.mxu0 0.0
    %139 = vmatprep.subr.mxu0 0.0
    %140 = vmatpush1.msra.mxu0 0.0
    %141 = vmatprep.subr.mxu0 0.0
    %142 = vmatpush1.msra.mxu0 0.0
    %143 = vmatprep.subr.mxu0 0.0
    %144 = vmatpush1.msra.mxu0 0.0
    %145 = vmatprep.subr.mxu0 0.0
    %146 = vmatpush1.msra.mxu0 0.0
    %147 = vmatprep.subr.mxu0 0.0
    %148 = vmatpush1.msra.mxu0 0.0
    %149 = vmatprep.subr.mxu0 0.0
    %150 = vmatpush1.msra.mxu0 0.0
    %151 = vmatprep.subr.mxu0 0.0
    %152 = vmatpush1.msra.mxu0 0.0
    %153 = vmatprep.subr.mxu0 0.0
    %154 = vmatpush1.msra.mxu0 0.0
    %155 = vmatprep.subr.mxu0 0.0
    %156 = vmatpush1.msra.mxu0 0.0
    %157 = vmatprep.subr.mxu0 0.0
    %158 = vmatpush1.msra.mxu0 0.0
    %159 = vmatprep.subr.mxu0 0.0
    %160 = vmatpush1.msra.mxu0 %v130
    %161 = vmatprep.subr.mxu0 0.0
    %162 = vmatpush1.msra.mxu0 %v129
    %163 = vmatprep.subr.mxu0 0.0
    %164 = vmatpush1.msra.mxu0 %v128
    %165 = vmatprep.subr.mxu0 0.0
    %166 = vmatpush1.msra.mxu0 %v127
    %167 = vmatprep.subr.mxu0 0.0
    %168 = vmatpush2.msra.mxu0 0.0
    %169 = vmatprep.subr.mxu0 0.0
    %170 = vmatpush2.msra.mxu0 0.0
    %171 = vmatprep.subr.mxu0 0.0
    %172 = vmatpush2.msra.mxu0 0.0
    %173 = vmatprep.subr.mxu0 0.0
    %174 = vmatpush2.msra.mxu0 0.0
    %175 = vmatprep.subr.mxu0 0.0
    %176 = vmatpush2.msra.mxu0 0.0
    %177 = vmatprep.subr.mxu0 0.0
    %178 = vmatpush2.msra.mxu0 0.0
    %179 = vmatprep.subr.mxu0 0.0
    %180 = vmatpush2.msra.mxu0 0.0
    %181 = vmatprep.subr.mxu0 0.0
    %182 = vmatpush2.msra.mxu0 0.0
    %183 = vmatprep.subr.mxu0 0.0
    %184 = vmatpush2.msra.mxu0 0.0
    %185 = vmatprep.subr.mxu0 0.0
    %186 = vmatpush2.msra.mxu0 0.0
    %187 = vmatprep.subr.mxu0 0.0
    %188 = vmatpush2.msra.mxu0 0.0
    %189 = vmatprep.subr.mxu0 0.0
    %190 = vmatpush2.msra.mxu0 0.0
    %191 = vmatprep.subr.mxu0 0.0
    %192 = vmatpush2.msra.mxu0 0.0
    %193 = vmatprep.subr.mxu0 0.0
    %194 = vmatpush2.msra.mxu0 0.0
    %195 = vmatprep.subr.mxu0 0.0
    %196 = vmatpush2.msra.mxu0 0.0
    %197 = vmatprep.subr.mxu0 0.0
    %198 = vmatpush2.msra.mxu0 0.0
    %199 = vmatprep.mubr.f32.mxu0 0.0
    %200 = vmatmul.mubr.f32.gmra.mxu0 %v133
    %v201 = vpop.f32.mrf.mxu0
    %v202 = vadd.f32 0.0, %v201
    %v203 = vpop.f32.mrf.mxu0
    %204 = vdwg.mxu0
    %v205 = vmul.f32 %v202, %v40
    %v206 = vsel %vm53, %v205, -inf
    %207 = vmax.xlane.f32.xlu0 %v206
    %v208 = vpop.xlane.xlu0 %207
    %v209 = vsub.f32 %v205, %v208
    %v210 = vmul.f32 %v209, 1.442695
    %v211 = vpow.pop %v210
    %v212 = vld [vmem:[%s6] sm:$0xff]
    %v214 = vsel %vm53, %v211, 0
    %216 = vmatprep.subr.mxu0 0.0
    %217 = vmatpush1.msra.mxu0 0.0
    %218 = vmatprep.subr.mxu0 0.0
    %219 = vmatpush1.msra.mxu0 0.0
    %220 = vmatprep.subr.mxu0 0.0
    %221 = vmatpush1.msra.mxu0 0.0
    %222 = vmatprep.subr.mxu0 0.0
    %223 = vmatpush1.msra.mxu0 0.0
    %224 = vmatprep.subr.mxu0 0.0
    %225 = vmatpush1.msra.mxu0 0.0
    %226 = vmatprep.subr.mxu0 0.0
    %227 = vmatpush1.msra.mxu0 0.0
    %228 = vmatprep.subr.mxu0 0.0
    %229 = vmatpush1.msra.mxu0 0.0
    %230 = vmatprep.subr.mxu0 0.0
    %231 = vmatpush1.msra.mxu0 0.0
    %232 = vmatprep.subr.mxu0 0.0
    %233 = vmatpush1.msra.mxu0 0.0
    %234 = vmatprep.subr.mxu0 0.0
    %235 = vmatpush1.msra.mxu0 0.0
    %236 = vmatprep.subr.mxu0 0.0
    %237 = vmatpush1.msra.mxu0 0.0
    %238 = vmatprep.subr.mxu0 0.0
    %239 = vmatpush1.msra.mxu0 0.0
    %240 = vmatprep.subr.mxu0 0.0
    %241 = vmatpush1.msra.mxu0 0.0
    %242 = vmatprep.subr.mxu0 0.0
    %243 = vmatpush1.msra.mxu0 0.0
    %244 = vmatprep.subr.mxu0 0.0
    %245 = vmatpush1.msra.mxu0 0.0
    %246 = vmatprep.subr.mxu0 0.0
    %247 = vmatpush1.msra.mxu0 %v212
    %248 = vmatprep.subr.mxu0 0.0
    %249 = vmatpush2.msra.mxu0 0.0
    %250 = vmatprep.subr.mxu0 0.0
    %251 = vmatpush2.msra.mxu0 0.0
    %252 = vmatprep.subr.mxu0 0.0
    %253 = vmatpush2.msra.mxu0 0.0
    %254 = vmatprep.subr.mxu0 0.0
    %255 = vmatpush2.msra.mxu0 0.0
    %256 = vmatprep.subr.mxu0 0.0
    %257 = vmatpush2.msra.mxu0 0.0
    %258 = vmatprep.subr.mxu0 0.0
    %259 = vmatpush2.msra.mxu0 0.0
    %260 = vmatprep.subr.mxu0 0.0
    %261 = vmatpush2.msra.mxu0 0.0
    %262 = vmatprep.subr.mxu0 0.0
    %263 = vmatpush2.msra.mxu0 0.0
    %264 = vmatprep.subr.mxu0 0.0
    %265 = vmatpush2.msra.mxu0 0.0
    %266 = vmatprep.subr.mxu0 0.0
    %267 = vmatpush2.msra.mxu0 0.0
    %268 = vmatprep.subr.mxu0 0.0
    %269 = vmatpush2.msra.mxu0 0.0
    %270 = vmatprep.subr.mxu0 0.0
    %271 = vmatpush2.msra.mxu0 0.0
    %272 = vmatprep.subr.mxu0 0.0
    %273 = vmatpush2.msra.mxu0 0.0
    %274 = vmatprep.subr.mxu0 0.0
    %275 = vmatpush2.msra.mxu0 0.0
    %276 = vmatprep.subr.mxu0 0.0
    %277 = vmatpush2.msra.mxu0 0.0
    %278 = vmatprep.subr.mxu0 0.0
    %279 = vmatpush2.msra.mxu0 0.0
    %280 = vmatprep.mubr.f32.mxu0 0.0
    %281 = vmatmul.mubr.f32.gmra.mxu0 %v214
    %v282 = vpop.f32.mrf.mxu0
    %v283 = vadd.f32 0.0, %v282
    %v284 = vpop.f32.mrf.mxu0
    %285 = vdwg.mxu0
    %s286 = sld [smem:[#allocation2]]
    %v287 = vrcp.pop %v283
    %v288 = vstv %s286
    %v289 = vmul.f32 %v288, %v287
    %291 = vset.pattern.permute.xlu0 0
    %292 = vperm.xlu0 %291, %v41
    %v293 = vpop.permute.xlu0 %292
    %v295 = vmul.f32 %v293, %v124
    %297 = vset.pattern.permute.xlu0 32
    %298 = vperm.xlu0 %297, %v289
    %v299 = vpop.permute.xlu0 %298
    %v301 = vmul.f32 %v299, %v283
    %v302 = vadd.f32 %v295, %v301
    %s303 = sld [smem:[#allocation2 + $0x1]]
    %v304 = vstv %s303
    %v305 = vmul.f32 %v304, %v45
    %v306 = vsub.f32 %v302, %v305
    %307 = vst.msk [vmem:[#allocation5] sm:$0xff] %vm131, %v306
    // Predicated region
    $region34: #{tpu_custom_call.1} parent=1 // pred_check
      _
    $region35: #{tpu_custom_call.1} parent=1 // pred_check_branch
      %309 = sbr.rel (0) target = $region37
    $region36: #{tpu_custom_call.1} parent=1 // pred_region
      %s311 = ssub.s32 128, 128
      %312 = vsyncadd [#allocation3], %s311
      %s314 = sshll.u32 [#allocation5], 4
      %s315 = int_to_ptr.vmem [resolvable:$true] %s314
      %317 = dma.vmem_to_hbm [thread:$0]  %s315, 128, %s7, [#allocation3]
    $region37: #{tpu_custom_call.1} parent=1 // pred_fallthru
      _
    // Predicated region
    $region38: #{tpu_custom_call.1} parent=1 // pred_check
      _
    $region39: #{tpu_custom_call.1} parent=1 // pred_check_branch
      %319 = sbr.rel (0) target = $region41
    $region40: #{tpu_custom_call.1} parent=1 // pred_region
      %320 = dma.done [#allocation3], 128
    $region41: #{tpu_custom_call.1} parent=1 // pred_fallthru
      _
    %321 = vsyncpa [#allocation3], 1
    %322 = vsyncpa [#allocation4], 1

</llo_original>
